<compile_context>
chip_gen: v5e
topology: v5e:2x2
jax: 0.10.0
libtpu: 0.0.40
codegen_flags: <defaults>
</compile_context>

<pallas_src>
import jax
import jax.numpy as jnp
import numpy as np
from jax.experimental import pallas as pl
from jax.experimental.pallas import tpu as pltpu


def rope_kernel(x_ref, cos_ref, sin_ref, o_ref):
    x = x_ref[...]            # (b_tile, TILE_S, D)
    cos = cos_ref[...]        # (1, TILE_S, D)
    sin = sin_ref[...]        # (1, TILE_S, D)  -- rotation sign already baked in
    D = x.shape[-1]

    # Loop-invariant, lane-only parity mask (tiny (1, 1, D) iota).
    lane = jax.lax.broadcasted_iota(jnp.int32, (1, 1, D), 2)
    is_even = (lane & 1) == 0

    # roll semantics: result[d] = x[(d - shift) mod D]
    x_next = pltpu.roll(x, shift=D - 1, axis=2)   # x[d+1]  (wrap at d=D-1 masked out)
    x_prev = pltpu.roll(x, shift=1, axis=2)       # x[d-1]  (wrap at d=0   masked out)

    # rot[2k] = x[2k+1], rot[2k+1] = x[2k]; the "-" lives in sin_signed.
    rot = jnp.where(is_even, x_next, x_prev)

    o_ref[...] = x * cos + rot * sin


def rope_pallas(x, inv_freq, seq_len, offset=0, *, tile_s=None, b_tile=None):
    """x: (B, S, D); inv_freq: (D//2,).  Matches the PyTorch RoPE.forward."""
    B, S, D = x.shape
    assert S == seq_len
    assert D % 2 == 0, "RoPE requires an even feature dim"

    dtype = x.dtype
    itemsize = jnp.dtype(dtype).itemsize
    min_s = 8 if itemsize >= 4 else 16        # sublane granularity (f32 / bf16)

    # ---------------- Host glue: tables (built once, not the hot path) -------
    t = jnp.arange(offset, offset + seq_len, dtype=jnp.float32)
    freqs = t[:, None] * inv_freq.astype(jnp.float32)[None, :]   # (S, D//2)
    emb = jnp.concatenate([freqs, freqs], axis=-1)               # (S, D)
    cos_emb = jnp.cos(emb)
    sin_emb = jnp.sin(emb)
    # Bake the rotation sign into sin: even lanes multiply -x[2k+1] -> -sin.
    lane = jnp.arange(D)
    sin_signed = jnp.where((lane % 2) == 0, -sin_emb, sin_emb)
    cos_emb = cos_emb.astype(dtype)[None]          # (1, S, D)
    sin_signed = sin_signed.astype(dtype)[None]    # (1, S, D)

    # ---------------- Tile selection (VMEM-budgeted, v7x-safe) ---------------
    # Per-step VMEM (double-buffered): 2*x + 2*out + 2*cos + 2*sin
    #   = (4*b_tile + 4) * tile_s * D * itemsize
    VMEM_BUDGET = 24 * 1024 * 1024

    if tile_s is None:
        if S % min_s == 0:
            per_row = 8 * D * itemsize           # bytes per seq-row per step (b_tile=1)
            tile_s = int(min(S, max(min_s, (VMEM_BUDGET // per_row) // min_s * min_s)))
        else:
            tile_s = S                           # full-extent block is always legal
    num_s = pl.cdiv(S, tile_s)

    if b_tile is None:
        b_tile = 1
        if num_s == 1 and B > 1:
            # Whole sequence in one tile: fold batches per block to amortize
            # per-step overhead, but keep >= 2 grid steps for megacore (v7x).
            b_tile = max(1, B // 2)
            while (4 * b_tile + 4) * tile_s * D * itemsize > VMEM_BUDGET and b_tile > 1:
                b_tile //= 2
    num_b = pl.cdiv(B, b_tile)

    grid = (num_s, num_b)   # batch innermost -> cos/sin block index constant per step

    x_spec = pl.BlockSpec((b_tile, tile_s, D), lambda si, bi: (bi, si, 0))
    tbl_spec = pl.BlockSpec((1, tile_s, D), lambda si, bi: (0, si, 0))
    out_spec = pl.BlockSpec((b_tile, tile_s, D), lambda si, bi: (bi, si, 0))

    cost = pl.CostEstimate(
        flops=4 * B * S * D,                                    # mul+mul+add+select
        transcendentals=0,
        bytes_accessed=(2 * B * S * D + 2 * S * D) * itemsize,  # x in/out + tables once
    )

    return pl.pallas_call(
        rope_kernel,
        out_shape=jax.ShapeDtypeStruct((B, S, D), dtype),
        grid_spec=pltpu.PrefetchScalarGridSpec(
            num_scalar_prefetch=0,
            grid=grid,
            in_specs=[x_spec, tbl_spec, tbl_spec],
            out_specs=out_spec,
        ),
        compiler_params=pltpu.CompilerParams(
            dimension_semantics=("parallel", "parallel"),
            vmem_limit_bytes=32 * 1024 * 1024,
        ),
        cost_estimate=cost,
    )(x, cos_emb, sin_signed)


def rope_ref(x, inv_freq, seq_len, offset=0):
    """Pure-JAX reference replicating the PyTorch forward exactly."""
    t = jnp.arange(offset, offset + seq_len, dtype=jnp.float32)
    freqs = jnp.einsum('i,j->ij', t, inv_freq)
    emb = jnp.concatenate([freqs, freqs], axis=-1)
    cos_emb = jnp.cos(emb)
    sin_emb = jnp.sin(emb)
    rot = jnp.stack([-x[..., 1::2], x[..., 0::2]], axis=-1).reshape(x.shape)
    return x * cos_emb + rot * sin_emb


if __name__ == "__main__":
    B, S, D = 2, 8, 128            # batch=2, seq=8, head_dim=128
    base = 10000.0
    offset = 0

    # Deterministic "parameters" (inv_freq as in __init__) and inputs.
    inv_freq = 1.0 / (base ** (jnp.arange(0, D, 2, dtype=jnp.float32) / D))
    x = jax.random.normal(jax.random.PRNGKey(0), (B, S, D), dtype=jnp.float32)

    out = rope_pallas(x, inv_freq, seq_len=S, offset=offset)
    out = jax.block_until_ready(out)

    ref = rope_ref(x, inv_freq, seq_len=S, offset=offset)
    np.testing.assert_allclose(np.asarray(out), np.asarray(ref),
                               rtol=1e-5, atol=1e-5)
    print("KERNEL_OK")
</pallas_src>

<mosaic_0001>
module attributes {stable_mosaic.version = 11 : i64} {
  func.func @rope_kernel(%arg0: i32, %arg1: i32, %arg2: memref<1x8x128xf32, #tpu.memory_space<vmem>>, %arg3: memref<1x8x128xf32, #tpu.memory_space<vmem>>, %arg4: memref<1x8x128xf32, #tpu.memory_space<vmem>>, %arg5: memref<1x8x128xf32, #tpu.memory_space<vmem>>) attributes {dimension_semantics = [#tpu.dimension_semantics<parallel>, #tpu.dimension_semantics<parallel>], iteration_bounds = array<i64: 1, 2>, scalar_prefetch = 0 : i64, scratch_operands = 0 : i64, tpu.core_type = #tpu.core_type<tc>, window_params = [{transform_indices = @transform_0, window_bounds = array<i64: 1, 8, 128>}, {transform_indices = @transform_1, window_bounds = array<i64: 1, 8, 128>}, {transform_indices = @transform_2, window_bounds = array<i64: 1, 8, 128>}, {transform_indices = @transform_3, window_bounds = array<i64: 1, 8, 128>}]} {
    %c0 = arith.constant 0 : index
    %c0_0 = arith.constant 0 : index
    %c0_1 = arith.constant 0 : index
    %0 = vector.load %arg2[%c0, %c0_0, %c0_1] : memref<1x8x128xf32, #tpu.memory_space<vmem>>, vector<1x8x128xf32>
    %c0_2 = arith.constant 0 : index
    %c0_3 = arith.constant 0 : index
    %c0_4 = arith.constant 0 : index
    %1 = vector.load %arg3[%c0_2, %c0_3, %c0_4] : memref<1x8x128xf32, #tpu.memory_space<vmem>>, vector<1x8x128xf32>
    %c0_5 = arith.constant 0 : index
    %c0_6 = arith.constant 0 : index
    %c0_7 = arith.constant 0 : index
    %2 = vector.load %arg4[%c0_5, %c0_6, %c0_7] : memref<1x8x128xf32, #tpu.memory_space<vmem>>, vector<1x8x128xf32>
    %3 = tpu.iota {dimensions = array<i32: 2>} : vector<1x1x128xi32>
    %c1_i32 = arith.constant 1 : i32
    %4 = vector.broadcast %c1_i32 : i32 to vector<1x1x128xi32>
    %5 = arith.andi %3, %4 : vector<1x1x128xi32>
    %c0_i32 = arith.constant 0 : i32
    %6 = vector.broadcast %c0_i32 : i32 to vector<1x1x128xi32>
    %7 = arith.cmpi eq, %5, %6 : vector<1x1x128xi32>
    %c127_i32 = arith.constant 127 : i32
    %8 = tpu.dynamic_rotate %0 by %c127_i32 dim 2 : vector<1x8x128xf32>, i32 -> vector<1x8x128xf32>
    %c1_i32_8 = arith.constant 1 : i32
    %9 = tpu.dynamic_rotate %0 by %c1_i32_8 dim 2 : vector<1x8x128xf32>, i32 -> vector<1x8x128xf32>
    %10 = vector.shape_cast %7 : vector<1x1x128xi1> to vector<1x1x128xi1>
    %11 = vector.broadcast %10 : vector<1x1x128xi1> to vector<1x8x128xi1>
    %12 = arith.select %11, %8, %9 : vector<1x8x128xi1>, vector<1x8x128xf32>
    %13 = arith.mulf %0, %1 : vector<1x8x128xf32>
    %14 = arith.mulf %12, %2 : vector<1x8x128xf32>
    %15 = arith.addf %13, %14 : vector<1x8x128xf32>
    %c0_9 = arith.constant 0 : index
    %c0_10 = arith.constant 0 : index
    %c0_11 = arith.constant 0 : index
    %16 = vector.load %arg5[%c0_9, %c0_10, %c0_11] : memref<1x8x128xf32, #tpu.memory_space<vmem>>, vector<1x8x128xf32>
    tpu.vector_store %arg5[%c0_9, %c0_10, %c0_11], %15 {strides = array<i32>} : memref<1x8x128xf32, #tpu.memory_space<vmem>>, vector<1x8x128xf32>,
    return
  }
  func.func @transform_0(%arg0: i32, %arg1: i32) -> (i32, i32, i32) {
    %c0_i32 = arith.constant 0 : i32
    %c0_i32_0 = arith.constant 0 : i32
    return %arg1, %arg0, %c0_i32 : i32, i32, i32
  }
  func.func @transform_1(%arg0: i32, %arg1: i32) -> (i32, i32, i32) {
    %c0_i32 = arith.constant 0 : i32
    %c0_i32_0 = arith.constant 0 : i32
    %c0_i32_1 = arith.constant 0 : i32
    return %c0_i32, %arg0, %c0_i32_0 : i32, i32, i32
  }
  func.func @transform_2(%arg0: i32, %arg1: i32) -> (i32, i32, i32) {
    %c0_i32 = arith.constant 0 : i32
    %c0_i32_0 = arith.constant 0 : i32
    %c0_i32_1 = arith.constant 0 : i32
    return %c0_i32, %arg0, %c0_i32_0 : i32, i32, i32
  }
  func.func @transform_3(%arg0: i32, %arg1: i32) -> (i32, i32, i32) {
    %c0_i32 = arith.constant 0 : i32
    %c0_i32_0 = arith.constant 0 : i32
    return %arg1, %arg0, %c0_i32 : i32, i32, i32
  }
}

</mosaic_0001>

<llo_original>
// kernel: tpu_custom_call.1
$region0: #{tpu_custom_call.1}
  #allocation0 [shape = 'u32[]', space=smem, size = 0x4, offset = 0x4, fixed_abs, tag = 'smem constant byte address 0x4 - core index']
  #allocation1 [shape = 'u32[72,128]{1,0:T(1,128)}', space=vmem, size = 0x9000, scoped, tag = 'internal scratch']
  %s0 = inlined_call_operand.hbm [shape: f32[2,8,128], index: 0, kind: input, shape index: {}]
  %s1 = inlined_call_operand.hbm [shape: f32[1,8,128], index: 1, kind: input, shape index: {}]
  %s2 = inlined_call_operand.hbm [shape: f32[1,8,128], index: 2, kind: input, shape index: {}]
  %s3 = inlined_call_operand.hbm [shape: f32[2,8,128], index: 3, kind: output, shape index: {}]
  %s4 = sld [smem:[#allocation0]]
  $region57: #{tpu_custom_call.1} parent=0
    _
  %s6 = ssub.s32 1, %s4
  %s7 = scalar_select 0, %s6, %s4
  $region1: #{tpu_custom_call.1} parent=0
    #allocation2 [shape = 'u8[8192]{0}', space=vmem, size = 0x2000, scoped, tag = 'input window, operand 0']
    #allocation3 [shape = 's32[2]{0}', space=sflag, size = 0x8, scoped, tag = 'scoped memory for tpu_custom_call.1']
    #allocation4 [shape = 's32[2]{0}', space=sflag, size = 0x8, scoped, tag = 'scoped memory for tpu_custom_call.1']
    #allocation5 [shape = 'u8[4096]{0}', space=vmem, size = 0x1000, scoped, tag = 'input window, operand 1, single buffered']
    #allocation6 [shape = 's32[1]{0}', space=sflag, size = 0x4, scoped, tag = 'scoped memory for tpu_custom_call.1']
    #allocation7 [shape = 'u8[4096]{0}', space=vmem, size = 0x1000, scoped, tag = 'input window, operand 2, single buffered']
    #allocation8 [shape = 'u8[8192]{0}', space=vmem, size = 0x2000, scoped, tag = 'output window, operand 0']
    %8 = vsyncpa [#allocation3], 0
    %s9 = scalar_lea.sflag [#allocation3], 1
    %10 = vsyncpa %s9, 0
    %11 = vsyncpa [#allocation6], 0
    %12 = vsyncpa [#allocation4], 0
    %s13 = scalar_lea.sflag [#allocation4], 1
    %14 = vsyncpa %s13, 0
    loop: start=0, step=1, limit=4
    $region2: #{tpu_custom_call.1} parent=1 // loop_pre_header
      _
    $region3: #{tpu_custom_call.1} parent=1 // loop_header
      %s16 = sphi 0, %s20
      %p17 = scmp.ge.s32.totalorder %s16, 4
      %s23 = sphi 0, %s35
      %s24 = sphi 0, %s31
      %s25 = sphi 0, %s23
      %s26 = sphi 0, %s24
      %s27 = sphi 0, %s25
      %s28 = sphi 0, %s26
      %s40 = sphi 0, %s42
      %s43 = sphi 0, %s40
      %s44 = sphi 0, %s43
      %s60 = sphi 0, %s44
      %s66 = sphi 0, %s68
      %s69 = sphi 0, %s66
      %s70 = sphi 0, %s69
      %s86 = sphi 0, %s70
      %s92 = sphi 0, %s94
      %s95 = sphi 0, %s92
      %s96 = sphi 0, %s95
      %s112 = sphi 0, %s96
      %s120 = sphi 0, %s122
      %s123 = sphi 0, %s120
      %s124 = sphi 0, %s123
      %s140 = sphi 0, %s124
    $region4: #{tpu_custom_call.1} parent=1 // loop_header_branch
      %19 = sbr.rel (%p17) target = $region8
    $region5: #{tpu_custom_call.1} parent=1 // loop_body
      %s21 = ssub.s32 %s16, 1
      %s22 = ssub.s32 %s16, 2
      %s29 = sadd.s32 1, %s24
      %p30 = scmp.ge.s32.totalorder %s29, 2
      %s31 = scalar_select %p30, 0, %s29
      %s32 = sadd.s32 1, %s23
      %s33 = scalar_select %p30, %s32, %s23
      %p34 = scmp.ge.s32.totalorder %s33, 1
      %s35 = scalar_select %p34, 0, %s33
      %s36 = ssub.s32 %s24, %s31
      %s37 = ssub.s32 %s23, %s35
      %s38 = sor.u32 %s36, %s37
      %p39 = scmp.eq.s32.totalorder %s38, 0
      %s41 = sadd.s32 %s40, 1
      %s42 = scalar_select %p39, %s40, %s41
      %p45 = pneg %p39
      %p46 = scmp.eq.s32.totalorder %s16, 1
      %p47 = por %p45, %p46
      %p48 = scmp.ne.s32.totalorder %s40, %s43
      %p49 = scmp.eq.s32.totalorder %s16, 0
      %p50 = por %p48, %p49
      %p51 = scmp.ne.s32.totalorder %s40, %s43
      %p52 = scmp.eq.s32.totalorder %s21, 1
      %p53 = por %p51, %p52
      %p54 = scmp.ne.s32.totalorder %s43, %s44
      %p55 = scmp.eq.s32.totalorder %s21, 0
      %p56 = por %p54, %p55
      %p57 = scmp.ne.s32.totalorder %s43, %s44
      %p58 = scmp.eq.s32.totalorder %s22, 1
      %p59 = por %p57, %p58
      %p61 = scmp.ne.s32.totalorder %s44, %s60
      %p62 = scmp.eq.s32.totalorder %s22, 0
      %p63 = por %p61, %p62
      %s64 = ssub.s32 %s23, %s35
      %p65 = scmp.eq.s32.totalorder %s64, 0
      %s67 = sadd.s32 %s66, 1
      %s68 = scalar_select %p65, %s66, %s67
      %p71 = pneg %p65
      %p72 = scmp.eq.s32.totalorder %s16, 1
      %p73 = por %p71, %p72
      %p74 = scmp.ne.s32.totalorder %s66, %s69
      %p75 = scmp.eq.s32.totalorder %s16, 0
      %p76 = por %p74, %p75
      %p77 = scmp.ne.s32.totalorder %s66, %s69
      %p78 = scmp.eq.s32.totalorder %s21, 1
      %p79 = por %p77, %p78
      %p80 = scmp.ne.s32.totalorder %s69, %s70
      %p81 = scmp.eq.s32.totalorder %s21, 0
      %p82 = por %p80, %p81
      %p83 = scmp.ne.s32.totalorder %s69, %s70
      %p84 = scmp.eq.s32.totalorder %s22, 1
      %p85 = por %p83, %p84
      %p87 = scmp.ne.s32.totalorder %s70, %s86
      %p88 = scmp.eq.s32.totalorder %s22, 0
      %p89 = por %p87, %p88
      %s90 = ssub.s32 %s23, %s35
      %p91 = scmp.eq.s32.totalorder %s90, 0
      %s93 = sadd.s32 %s92, 1
      %s94 = scalar_select %p91, %s92, %s93
      %p97 = pneg %p91
      %p98 = scmp.eq.s32.totalorder %s16, 1
      %p99 = por %p97, %p98
      %p100 = scmp.ne.s32.totalorder %s92, %s95
      %p101 = scmp.eq.s32.totalorder %s16, 0
      %p102 = por %p100, %p101
      %p103 = scmp.ne.s32.totalorder %s92, %s95
      %p104 = scmp.eq.s32.totalorder %s21, 1
      %p105 = por %p103, %p104
      %p106 = scmp.ne.s32.totalorder %s95, %s96
      %p107 = scmp.eq.s32.totalorder %s21, 0
      %p108 = por %p106, %p107
      %p109 = scmp.ne.s32.totalorder %s95, %s96
      %p110 = scmp.eq.s32.totalorder %s22, 1
      %p111 = por %p109, %p110
      %p113 = scmp.ne.s32.totalorder %s96, %s112
      %p114 = scmp.eq.s32.totalorder %s22, 0
      %p115 = por %p113, %p114
      %s116 = ssub.s32 %s24, %s31
      %s117 = ssub.s32 %s23, %s35
      %s118 = sor.u32 %s116, %s117
      %p119 = scmp.eq.s32.totalorder %s118, 0
      %s121 = sadd.s32 %s120, 1
      %s122 = scalar_select %p119, %s120, %s121
      %p125 = pneg %p119
      %p126 = scmp.eq.s32.totalorder %s16, 1
      %p127 = por %p125, %p126
      %p128 = scmp.ne.s32.totalorder %s120, %s123
      %p129 = scmp.eq.s32.totalorder %s16, 0
      %p130 = por %p128, %p129
      %p131 = scmp.ne.s32.totalorder %s120, %s123
      %p132 = scmp.eq.s32.totalorder %s21, 1
      %p133 = por %p131, %p132
      %p134 = scmp.ne.s32.totalorder %s123, %s124
      %p135 = scmp.eq.s32.totalorder %s21, 0
      %p136 = por %p134, %p135
      %p137 = scmp.ne.s32.totalorder %s123, %s124
      %p138 = scmp.eq.s32.totalorder %s22, 1
      %p139 = por %p137, %p138
      %p141 = scmp.ne.s32.totalorder %s124, %s140
      %p142 = scmp.eq.s32.totalorder %s22, 0
      %p143 = por %p141, %p142
      %p144 = scmp.le.s32.totalorder 1, %s16
      %p145 = scmp.lt.s32.totalorder %s16, 3
      %p146 = pnand %p144, %p145
      %p147 = pneg %p146
      // Predicated region
      $region9: #{tpu_custom_call.1} parent=5 // pred_check
        _
      $region10: #{tpu_custom_call.1} parent=5 // pred_check_branch
        %149 = sbr.rel (%p146) target = $region12
      $region11: #{tpu_custom_call.1} parent=5 // pred_region
        %s150 = ssub.s32 %s16, 1
        // Predicated region
        $region13: #{tpu_custom_call.1} parent=11 // pred_check
          %p151 = pneg %p82
        $region14: #{tpu_custom_call.1} parent=11 // pred_check_branch
          %153 = sbr.rel (%p151) target = $region16
        $region15: #{tpu_custom_call.1} parent=11 // pred_region
          %155 = vsyncadd [#allocation6], 0
          %s156 = smul.addr %s25, 8
          %s157 = scalar_lea.hbm %s1, %s156
          %s159 = sshll.u32 %s157, 4
          %s160 = int_to_ptr.hbm [resolvable:$true] %s159
          %s161 = sshll.u32 [#allocation5], 4
          %s162 = int_to_ptr.vmem [resolvable:$true] %s161
          %164 = dma.hbm_to_vmem [thread:$0]  %s160, 128, %s162, [#allocation6]
        $region16: #{tpu_custom_call.1} parent=11 // pred_fallthru
          _
        // Predicated region
        $region17: #{tpu_custom_call.1} parent=11 // pred_check
          %p165 = pneg %p108
        $region18: #{tpu_custom_call.1} parent=11 // pred_check_branch
          %167 = sbr.rel (%p165) target = $region20
        $region19: #{tpu_custom_call.1} parent=11 // pred_region
          %169 = vsyncadd [#allocation6], 0
          %s170 = smul.addr %s25, 8
          %s171 = scalar_lea.hbm %s2, %s170
          %s173 = sshll.u32 %s171, 4
          %s174 = int_to_ptr.hbm [resolvable:$true] %s173
          %s175 = sshll.u32 [#allocation7], 4
          %s176 = int_to_ptr.vmem [resolvable:$true] %s175
          %178 = dma.hbm_to_vmem [thread:$0]  %s174, 128, %s176, [#allocation6]
        $region20: #{tpu_custom_call.1} parent=11 // pred_fallthru
          _
      $region12: #{tpu_custom_call.1} parent=5 // pred_fallthru
        _
      %p179 = scmp.lt.s32.totalorder %s16, 2
      // Predicated region
      $region21: #{tpu_custom_call.1} parent=5 // pred_check
        %p180 = pneg %p179
      $region22: #{tpu_custom_call.1} parent=5 // pred_check_branch
        %182 = sbr.rel (%p180) target = $region24
      $region23: #{tpu_custom_call.1} parent=5 // pred_region
        // Predicated region
        $region25: #{tpu_custom_call.1} parent=23 // pred_check
          %p183 = pneg %p50
        $region26: #{tpu_custom_call.1} parent=23 // pred_check_branch
          %185 = sbr.rel (%p183) target = $region28
        $region27: #{tpu_custom_call.1} parent=23 // pred_region
          %s186 = sand.u32 %s40, 1
          %s187 = scalar_lea.sflag [#allocation3], %s186
          %s188 = sand.u32 %s40, 1
          %s189 = smul.addr %s188, 8
          %s190 = scalar_lea.vmem [#allocation2], %s189
          %192 = vsyncadd %s187, 0
          %s193 = sadd.s32 %s23, %s24
          %s194 = smul.addr %s193, 8
          %s195 = scalar_lea.hbm %s0, %s194
          %s197 = sshll.u32 %s195, 4
          %s198 = int_to_ptr.hbm [resolvable:$true] %s197
          %s199 = sshll.u32 %s190, 4
          %s200 = int_to_ptr.vmem [resolvable:$true] %s199
          %202 = dma.hbm_to_vmem [thread:$0]  %s198, 128, %s200, %s187
        $region28: #{tpu_custom_call.1} parent=23 // pred_fallthru
          _
      $region24: #{tpu_custom_call.1} parent=5 // pred_fallthru
        _
      %p203 = scmp.le.s32.totalorder 1, %s16
      %p204 = scmp.lt.s32.totalorder %s16, 3
      %p205 = pnand %p203, %p204
      %p206 = pneg %p205
      // Predicated region
      $region29: #{tpu_custom_call.1} parent=5 // pred_check
        _
      $region30: #{tpu_custom_call.1} parent=5 // pred_check_branch
        %208 = sbr.rel (%p205) target = $region32
      $region31: #{tpu_custom_call.1} parent=5 // pred_region
        %s209 = ssub.s32 %s16, 1
        %s210 = sand.u32 %s43, 1
        %s211 = scalar_lea.sflag [#allocation3], %s210
        %s212 = sand.u32 %s43, 1
        %s213 = smul.addr %s212, 8
        %s214 = scalar_lea.vmem [#allocation2], %s213
        // Predicated region
        $region33: #{tpu_custom_call.1} parent=31 // pred_check
          %p215 = pneg %p56
        $region34: #{tpu_custom_call.1} parent=31 // pred_check_branch
          %217 = sbr.rel (%p215) target = $region36
        $region35: #{tpu_custom_call.1} parent=31 // pred_region
          %219 = dma.done %s211, 128
        $region36: #{tpu_custom_call.1} parent=31 // pred_fallthru
          _
        // Predicated region
        $region37: #{tpu_custom_call.1} parent=31 // pred_check
          %p220 = pneg %p82
        $region38: #{tpu_custom_call.1} parent=31 // pred_check_branch
          %222 = sbr.rel (%p220) target = $region40
        $region39: #{tpu_custom_call.1} parent=31 // pred_region
          %224 = dma.done [#allocation6], 128
        $region40: #{tpu_custom_call.1} parent=31 // pred_fallthru
          _
        // Predicated region
        $region41: #{tpu_custom_call.1} parent=31 // pred_check
          %p225 = pneg %p108
        $region42: #{tpu_custom_call.1} parent=31 // pred_check_branch
          %227 = sbr.rel (%p225) target = $region44
        $region43: #{tpu_custom_call.1} parent=31 // pred_region
          %229 = dma.done [#allocation6], 128
        $region44: #{tpu_custom_call.1} parent=31 // pred_fallthru
          _
        %s230 = sand.u32 %s43, 1
        %s231 = scalar_lea.sflag [#allocation3], %s230
        %s232 = sand.u32 %s43, 1
        %s233 = smul.addr %s232, 8
        %s234 = scalar_lea.vmem [#allocation2], %s233
        %p235 = pneg %p56
        %p236 = pneg %p53
        %p237 = pneg %p82
        %p238 = pneg %p79
        %p239 = pneg %p108
        %p240 = pneg %p105
        %p241 = pneg %p136
        %p242 = pneg %p133
        %s243 = sand.u32 %s123, 1
        %s244 = scalar_lea.sflag [#allocation4], %s243
        %s245 = sand.u32 %s123, 1
        %s246 = smul.addr %s245, 8
        %s247 = scalar_lea.vmem [#allocation8], %s246
        %v248 = vld [vmem:[%s214] sm:$0xff]
        %v249 = vld [vmem:[#allocation5] sm:$0xff]
        %v250 = vld [vmem:[#allocation7] sm:$0xff]
        %v251 = vlaneseq
        %v252 = vand.u32 %v251, 127
        %v253 = vand.u32 %v252, 1
        %vm254 = vcmp.eq.s32.totalorder %v253, 0
        %255 = vrot.lane.b32.xlu0 %v248, 127
        %v256 = vpop.permute.xlu0 %255
        %257 = vrot.lane.b32.xlu0 %v248, 1
        %v258 = vpop.permute.xlu0 %257
        %v259 = vsel %vm254, 1, 0
        %vm260 = vcmp.eq.s32.totalorder %v259, 1
        %v261 = vsel %vm260, %v256, %v258
        %v262 = vmul.f32 %v248, %v249
        %v263 = vmul.f32 %v261, %v250
        %v264 = vadd.f32 %v262, %v263
        %265 = vst [vmem:[%s247] sm:$0xff] %v264
        %s266 = sand.u32 %s123, 1
        %s267 = scalar_lea.sflag [#allocation4], %s266
        %s268 = sand.u32 %s123, 1
        %s269 = smul.addr %s268, 8
        %s270 = scalar_lea.vmem [#allocation8], %s269
        // Predicated region
        $region45: #{tpu_custom_call.1} parent=31 // pred_check
          %p271 = pneg %p133
        $region46: #{tpu_custom_call.1} parent=31 // pred_check_branch
          %273 = sbr.rel (%p271) target = $region48
        $region47: #{tpu_custom_call.1} parent=31 // pred_region
          %275 = vsyncadd %s267, 0
          %s276 = sadd.s32 %s25, %s26
          %s277 = smul.addr %s276, 8
          %s278 = scalar_lea.hbm %s3, %s277
          %s280 = sshll.u32 %s270, 4
          %s281 = int_to_ptr.vmem [resolvable:$true] %s280
          %s282 = sshll.u32 %s278, 4
          %s283 = int_to_ptr.hbm [resolvable:$true] %s282
          %285 = dma.vmem_to_hbm [thread:$0]  %s281, 128, %s283, %s267
        $region48: #{tpu_custom_call.1} parent=31 // pred_fallthru
          _
      $region32: #{tpu_custom_call.1} parent=5 // pred_fallthru
        _
      %p286 = scmp.le.s32.totalorder 2, %s16
      // Predicated region
      $region49: #{tpu_custom_call.1} parent=5 // pred_check
        %p287 = pneg %p286
      $region50: #{tpu_custom_call.1} parent=5 // pred_check_branch
        %289 = sbr.rel (%p287) target = $region52
      $region51: #{tpu_custom_call.1} parent=5 // pred_region
        %s290 = ssub.s32 %s16, 2
        // Predicated region
        $region53: #{tpu_custom_call.1} parent=51 // pred_check
          %p291 = pneg %p139
        $region54: #{tpu_custom_call.1} parent=51 // pred_check_branch
          %293 = sbr.rel (%p291) target = $region56
        $region55: #{tpu_custom_call.1} parent=51 // pred_region
          %s294 = sand.u32 %s124, 1
          %s295 = scalar_lea.sflag [#allocation4], %s294
          %s296 = sand.u32 %s124, 1
          %s297 = smul.addr %s296, 8
          %s298 = scalar_lea.vmem [#allocation8], %s297
          %300 = dma.done %s295, 128
        $region56: #{tpu_custom_call.1} parent=51 // pred_fallthru
          _
      $region52: #{tpu_custom_call.1} parent=5 // pred_fallthru
        _
    $region6: #{tpu_custom_call.1} parent=1 // loop_footer
      %s20 = sadd.s32 1, %s16
    $region7: #{tpu_custom_call.1} parent=1 // loop_footer_branch
      %15 = sbr.rel target = $region3
    $region8: #{tpu_custom_call.1} parent=1 // loop_exit
      _
    %301 = vsyncpa [#allocation3], 1
    %s302 = scalar_lea.sflag [#allocation3], 1
    %303 = vsyncpa %s302, 1
    %304 = vsyncpa [#allocation6], 1
    %305 = vsyncpa [#allocation4], 1
    %s306 = scalar_lea.sflag [#allocation4], 1
    %307 = vsyncpa %s306, 1

</llo_original>
